<compile_context>
chip_gen: v7x
topology: tpu7x:2x2x1
jax: 0.10.0
libtpu: 0.0.40
codegen_flags: <defaults>
</compile_context>

<pallas_src>
import math

import jax
import jax.numpy as jnp
from jax.experimental import pallas as pl
from jax.experimental.pallas import tpu as pltpu

_LANE = 128
_SMALL_FAST_PATH_BYTES = 1 << 20  # below this a fused XLA add beats kernel launch overhead


def _round_up(n: int, m: int) -> int:
    return ((n + m - 1) // m) * m


def _cdiv(a: int, b: int) -> int:
    return -(-a // b)


def _pe_add_kernel(x_ref, pe_ref, o_ref):
    # x_ref / o_ref: (B_TILE, D, T_TILE); pe_ref: (D, T_TILE) broadcast over the batch dim.
    # Broadcast + add fuses on the VPU; explicit cast keeps bf16 outputs exact-width.
    o_ref[...] = (x_ref[...] + pe_ref[...][None, :, :]).astype(o_ref.dtype)


def make_positional_encoding_table(d_model: int, max_len: int = 5000,
                                   dtype=jnp.float32) -> jnp.ndarray:
    """Deterministic pe buffer identical to the PyTorch __init__, laid out (d_model, max_len_pad).

    max_len is rounded up to a multiple of 128 so the kernel's time tiling is always
    lane-dense; the extra positions are valid sinusoids that are never read for T <= max_len.
    """
    # The PyTorch original silently breaks for odd d_model (shape mismatch on pe[:, 1::2]).
    assert d_model % 2 == 0, "PositionalEncoding requires an even d_model"
    max_len_pad = _round_up(max_len, _LANE)
    position = jnp.arange(0, max_len_pad, dtype=jnp.float32)[:, None]              # (L, 1)
    div_term = jnp.exp(
        jnp.arange(0, d_model, 2, dtype=jnp.float32) * (-math.log(10000.0) / d_model)
    )                                                                               # (D//2,)
    pe = jnp.zeros((max_len_pad, d_model), dtype=jnp.float32)
    pe = pe.at[:, 0::2].set(jnp.sin(position * div_term))
    pe = pe.at[:, 1::2].set(jnp.cos(position * div_term))
    return jnp.transpose(pe, (1, 0)).astype(dtype)                                  # (D, L)


def _target_block_bytes() -> int:
    """Generation-dependent x-block target.

    v7x (~3.2 TB/s per TC): 2 MiB is only ~0.7us of DMA vs ~0.35us fixed per-step overhead,
    so use ~4 MiB; 2x(x)+2x(out)+pe at 4 MiB stays under the 32 MiB default scoped VMEM.
    v6e: 2 MiB already sits at the measured ~85% roofline plateau.
    v5e: keep 2 MiB so the 4-buffer working set fits the 16 MiB default scoped VMEM.
    """
    try:
        kind = jax.devices()[0].device_kind.lower()
    except Exception:  # no accelerator info available at trace time
        kind = ""
    if "v7" in kind:
        return 4 * 1024 * 1024
    return 2 * 1024 * 1024


def _choose_tiles(B: int, D: int, T: int, itemsize: int, target_bytes: int):
    """Pick (B_TILE, T_TILE): lane-dense time tiles near the target block size, masked edges."""
    T_ceil = _round_up(T, _LANE)
    row_bytes = D * itemsize
    # Largest multiple of 128 time steps that keeps one batch slab under the target.
    t_tile = max(_LANE, (target_bytes // max(row_bytes * _LANE, 1)) * _LANE)
    t_tile = min(t_tile, T_ceil)
    # Merge batch elements into the block when a single (D, t_tile) slab is small.
    slab = D * t_tile * itemsize
    b_tile = max(1, min(B, target_bytes // max(slab, 1)))
    # Guarantee >= 2 "parallel" grid steps so both TensorCores (v7x) get work and DMA
    # overlaps across steps.  Prefer splitting batch; otherwise split time.
    if _cdiv(B, b_tile) * _cdiv(T, t_tile) < 2:
        if B > 1:
            b_tile = _cdiv(B, 2)
        elif T_ceil >= 2 * _LANE:
            n_steps = min(4, T_ceil // _LANE)
            t_tile = _round_up(_cdiv(T_ceil, n_steps), _LANE)
    return b_tile, t_tile


def _make_pe_add_call(B, D, T, b_tile, t_tile, dtype, itemsize, single_buffer_pe):
    grid_t = _cdiv(T, t_tile)
    grid_b = _cdiv(B, b_tile)

    x_spec = pl.BlockSpec((b_tile, D, t_tile), lambda t, b: (b, 0, t))
    out_spec = pl.BlockSpec((b_tile, D, t_tile), lambda t, b: (b, 0, t))
    # pe's block index only depends on t; with the batch axis innermost it is (re-)fetched
    # only when the time tile advances, so a single VMEM buffer suffices when grid_b > 1.
    if single_buffer_pe:
        pe_spec = pl.BlockSpec((D, t_tile), lambda t, b: (0, t),
                               pipeline_mode=pl.Buffered(1))
    else:
        pe_spec = pl.BlockSpec((D, t_tile), lambda t, b: (0, t))

    return pl.pallas_call(
        _pe_add_kernel,
        out_shape=jax.ShapeDtypeStruct((B, D, T), dtype),
        grid_spec=pltpu.PrefetchScalarGridSpec(
            num_scalar_prefetch=0,
            grid=(grid_t, grid_b),
            in_specs=[x_spec, pe_spec],
            out_specs=out_spec,
        ),
        compiler_params=pltpu.CompilerParams(
            dimension_semantics=("parallel", "parallel"),
        ),
        # Memory-bound elementwise op: tell XLA what it actually moves.
        cost_estimate=pl.CostEstimate(
            flops=B * D * T,
            transcendentals=0,
            bytes_accessed=(2 * B + 1) * D * T * itemsize,
        ),
    )


def positional_encoding_forward(x: jnp.ndarray, pe: jnp.ndarray, *,
                                force_kernel: bool = False) -> jnp.ndarray:
    """x: (B, D, T).  pe: (D, max_len_pad) from make_positional_encoding_table.

    Returns x + pe[None, :, :T]  (dropout p=0.0 is the identity).
    """
    B, D, T = x.shape
    assert pe.shape[0] == D, "pe table d_model mismatch"
    assert T <= pe.shape[1], "seq_len exceeds the positional-encoding table length"

    if pe.dtype != x.dtype:
        # Keep the pe stream at x's width (halves pe HBM reads for bf16 inputs).
        pe = pe.astype(x.dtype)
    itemsize = jnp.dtype(x.dtype).itemsize

    # Small-size fast path: grid/launch overhead dominates; let XLA fuse the add.
    if not force_kernel and B * D * T * itemsize < _SMALL_FAST_PATH_BYTES:
        return x + pe[None, :, :T]

    b_tile, t_tile = _choose_tiles(B, D, T, itemsize, _target_block_bytes())
    grid_b = _cdiv(B, b_tile)

    if grid_b > 1:
        try:
            return _make_pe_add_call(B, D, T, b_tile, t_tile, x.dtype, itemsize,
                                     single_buffer_pe=True)(x, pe)
        except (TypeError, AttributeError, NotImplementedError, pltpu.LoweringException):
            pass  # pipeline_mode=pl.Buffered(1) unsupported -> default double buffering
    return _make_pe_add_call(B, D, T, b_tile, t_tile, x.dtype, itemsize,
                             single_buffer_pe=False)(x, pe)


def positional_encoding_ref(x: jnp.ndarray, pe: jnp.ndarray) -> jnp.ndarray:
    """Pure-JAX reference mirroring the PyTorch forward (dropout p=0.0 is identity)."""
    return x + pe.astype(x.dtype)[None, :, : x.shape[-1]]


if __name__ == "__main__":
    # Small shapes consistent with the module: batch=2, d_model=32, seq_len=128.
    B, D, T = 2, 32, 128
    MAX_LEN = 5000

    key = jax.random.PRNGKey(0)
    x = jax.random.normal(key, (B, D, T), dtype=jnp.float32)
    pe = make_positional_encoding_table(D, MAX_LEN)

    # Pallas kernel path (forced, since the demo size is below the XLA fast-path cutoff).
    ref = positional_encoding_ref(x, pe)
    out = jax.block_until_ready(positional_encoding_forward(x, pe, force_kernel=True))
    assert out.shape == (B, D, T)
    assert jnp.allclose(out, ref, atol=1e-6, rtol=1e-6), "kernel mismatch vs. reference"

    # Default dispatch at this size takes the fused-XLA fast path.
    out_fast = jax.block_until_ready(positional_encoding_forward(x, pe))
    assert jnp.allclose(out_fast, ref, atol=1e-6, rtol=1e-6), "fast path mismatch"

    # Non-multiple-of-128 seq_len exercises the masked ragged final time tile.
    T2 = 200
    x2 = jax.random.normal(jax.random.PRNGKey(1), (B, D, T2), dtype=jnp.float32)
    ref2 = positional_encoding_ref(x2, pe)
    out2 = jax.block_until_ready(positional_encoding_forward(x2, pe, force_kernel=True))
    assert out2.shape == (B, D, T2)
    assert jnp.allclose(out2, ref2, atol=1e-6, rtol=1e-6), "ragged-T kernel mismatch"

    print("KERNEL_OK")
</pallas_src>

<mosaic_0001>
module attributes {stable_mosaic.version = 11 : i64} {
  func.func @_pe_add_kernel(%arg0: i32, %arg1: i32, %arg2: memref<1x32x128xf32, #tpu.memory_space<vmem>>, %arg3: memref<32x128xf32, #tpu.memory_space<vmem>>, %arg4: memref<1x32x128xf32, #tpu.memory_space<vmem>>) attributes {dimension_semantics = [#tpu.dimension_semantics<parallel>, #tpu.dimension_semantics<parallel>], iteration_bounds = array<i64: 1, 2>, scalar_prefetch = 0 : i64, scratch_operands = 0 : i64, tpu.core_type = #tpu.core_type<tc>, window_params = [{transform_indices = @transform_0, window_bounds = array<i64: 1, 32, 128>}, {pipeline_mode = #tpu.pipeline_mode<synchronous>, transform_indices = @transform_1, window_bounds = array<i64: 32, 128>}, {transform_indices = @transform_2, window_bounds = array<i64: 1, 32, 128>}]} {
    %c0 = arith.constant 0 : index
    %c0_0 = arith.constant 0 : index
    %c0_1 = arith.constant 0 : index
    %0 = vector.load %arg2[%c0, %c0_0, %c0_1] : memref<1x32x128xf32, #tpu.memory_space<vmem>>, vector<1x32x128xf32>
    %c0_2 = arith.constant 0 : index
    %c0_3 = arith.constant 0 : index
    %1 = vector.load %arg3[%c0_2, %c0_3] : memref<32x128xf32, #tpu.memory_space<vmem>>, vector<32x128xf32>
    %2 = vector.shape_cast %1 : vector<32x128xf32> to vector<1x32x128xf32>
    %3 = arith.addf %0, %2 : vector<1x32x128xf32>
    %c0_4 = arith.constant 0 : index
    %c0_5 = arith.constant 0 : index
    %c0_6 = arith.constant 0 : index
    %4 = vector.load %arg4[%c0_4, %c0_5, %c0_6] : memref<1x32x128xf32, #tpu.memory_space<vmem>>, vector<1x32x128xf32>
    tpu.vector_store %arg4[%c0_4, %c0_5, %c0_6], %3 {strides = array<i32>} : memref<1x32x128xf32, #tpu.memory_space<vmem>>, vector<1x32x128xf32>,
    return
  }
  func.func @transform_0(%arg0: i32, %arg1: i32) -> (i32, i32, i32) {
    %c0_i32 = arith.constant 0 : i32
    %c0_i32_0 = arith.constant 0 : i32
    return %arg1, %c0_i32, %arg0 : i32, i32, i32
  }
  func.func @transform_1(%arg0: i32, %arg1: i32) -> (i32, i32) {
    %c0_i32 = arith.constant 0 : i32
    %c0_i32_0 = arith.constant 0 : i32
    return %c0_i32, %arg0 : i32, i32
  }
  func.func @transform_2(%arg0: i32, %arg1: i32) -> (i32, i32, i32) {
    %c0_i32 = arith.constant 0 : i32
    %c0_i32_0 = arith.constant 0 : i32
    return %arg1, %c0_i32, %arg0 : i32, i32, i32
  }
}

</mosaic_0001>

<llo_original>
// kernel: tpu_custom_call.1
$region0: #{tpu_custom_call.1}
  #allocation0 [shape = 'u32[]', space=smem, size = 0x4, offset = 0x4, fixed_abs, tag = 'smem constant byte address 0x4 - core index']
  #allocation1 [shape = 'u32[144,128]{1,0:T(1,128)}', space=vmem, size = 0x12000, scoped, tag = 'internal scratch']
  %s0 = inlined_call_operand.hbm [shape: f32[2,32,128], index: 0, kind: input, shape index: {}]
  %s1 = inlined_call_operand.hbm [shape: f32[32,5120], index: 1, kind: input, shape index: {}]
  %s2 = inlined_call_operand.hbm [shape: f32[2,32,128], index: 2, kind: output, shape index: {}]
  %s3 = sld [smem:[#allocation0]]
  $region49: #{tpu_custom_call.1} parent=0
    _
  %s5 = ssub.s32 1, %s3
  %s6 = scalar_select 0, %s5, %s3
  $region1: #{tpu_custom_call.1} parent=0
    #allocation2 [shape = 'u8[32768]{0}', space=vmem, size = 0x8000, scoped, tag = 'input window, operand 0']
    #allocation3 [shape = 's32[2]{0}', space=sflag, size = 0x8, scoped, tag = 'scoped memory for tpu_custom_call.1']
    #allocation4 [shape = 's32[2]{0}', space=sflag, size = 0x8, scoped, tag = 'scoped memory for tpu_custom_call.1']
    #allocation5 [shape = 'u8[16384]{0}', space=vmem, size = 0x4000, scoped, tag = 'input window, operand 1, single buffered']
    #allocation6 [shape = 's32[1]{0}', space=sflag, size = 0x4, scoped, tag = 'scoped memory for tpu_custom_call.1']
    #allocation7 [shape = 'u8[32768]{0}', space=vmem, size = 0x8000, scoped, tag = 'output window, operand 0']
    %7 = vsyncpa [#allocation3], 0
    %s8 = scalar_lea.sflag [#allocation3], 1
    %9 = vsyncpa %s8, 0
    %10 = vsyncpa [#allocation6], 0
    %11 = vsyncpa [#allocation4], 0
    %s12 = scalar_lea.sflag [#allocation4], 1
    %13 = vsyncpa %s12, 0
    loop: start=0, step=1, limit=4
    $region2: #{tpu_custom_call.1} parent=1 // loop_pre_header
      _
    $region3: #{tpu_custom_call.1} parent=1 // loop_header
      %s15 = sphi 0, %s19
      %p16 = scmp.ge.s32.totalorder %s15, 4
      %s22 = sphi 0, %s34
      %s23 = sphi 0, %s30
      %s24 = sphi 0, %s22
      %s25 = sphi 0, %s23
      %s26 = sphi 0, %s24
      %s27 = sphi 0, %s25
      %s39 = sphi 0, %s41
      %s42 = sphi 0, %s39
      %s43 = sphi 0, %s42
      %s59 = sphi 0, %s43
      %s65 = sphi 0, %s67
      %s68 = sphi 0, %s65
      %s69 = sphi 0, %s68
      %s85 = sphi 0, %s69
      %s93 = sphi 0, %s95
      %s96 = sphi 0, %s93
      %s97 = sphi 0, %s96
      %s113 = sphi 0, %s97
    $region4: #{tpu_custom_call.1} parent=1 // loop_header_branch
      %18 = sbr.rel (%p16) target = $region8
    $region5: #{tpu_custom_call.1} parent=1 // loop_body
      %s20 = ssub.s32 %s15, 1
      %s21 = ssub.s32 %s15, 2
      %s28 = sadd.s32 1, %s23
      %p29 = scmp.ge.s32.totalorder %s28, 2
      %s30 = scalar_select %p29, 0, %s28
      %s31 = sadd.s32 1, %s22
      %s32 = scalar_select %p29, %s31, %s22
      %p33 = scmp.ge.s32.totalorder %s32, 1
      %s34 = scalar_select %p33, 0, %s32
      %s35 = ssub.s32 %s23, %s30
      %s36 = ssub.s32 %s22, %s34
      %s37 = sor.u32 %s35, %s36
      %p38 = scmp.eq.s32.totalorder %s37, 0
      %s40 = sadd.s32 %s39, 1
      %s41 = scalar_select %p38, %s39, %s40
      %p44 = pneg %p38
      %p45 = scmp.eq.s32.totalorder %s15, 1
      %p46 = por %p44, %p45
      %p47 = scmp.ne.s32.totalorder %s39, %s42
      %p48 = scmp.eq.s32.totalorder %s15, 0
      %p49 = por %p47, %p48
      %p50 = scmp.ne.s32.totalorder %s39, %s42
      %p51 = scmp.eq.s32.totalorder %s20, 1
      %p52 = por %p50, %p51
      %p53 = scmp.ne.s32.totalorder %s42, %s43
      %p54 = scmp.eq.s32.totalorder %s20, 0
      %p55 = por %p53, %p54
      %p56 = scmp.ne.s32.totalorder %s42, %s43
      %p57 = scmp.eq.s32.totalorder %s21, 1
      %p58 = por %p56, %p57
      %p60 = scmp.ne.s32.totalorder %s43, %s59
      %p61 = scmp.eq.s32.totalorder %s21, 0
      %p62 = por %p60, %p61
      %s63 = ssub.s32 %s22, %s34
      %p64 = scmp.eq.s32.totalorder %s63, 0
      %s66 = sadd.s32 %s65, 1
      %s67 = scalar_select %p64, %s65, %s66
      %p70 = pneg %p64
      %p71 = scmp.eq.s32.totalorder %s15, 1
      %p72 = por %p70, %p71
      %p73 = scmp.ne.s32.totalorder %s65, %s68
      %p74 = scmp.eq.s32.totalorder %s15, 0
      %p75 = por %p73, %p74
      %p76 = scmp.ne.s32.totalorder %s65, %s68
      %p77 = scmp.eq.s32.totalorder %s20, 1
      %p78 = por %p76, %p77
      %p79 = scmp.ne.s32.totalorder %s68, %s69
      %p80 = scmp.eq.s32.totalorder %s20, 0
      %p81 = por %p79, %p80
      %p82 = scmp.ne.s32.totalorder %s68, %s69
      %p83 = scmp.eq.s32.totalorder %s21, 1
      %p84 = por %p82, %p83
      %p86 = scmp.ne.s32.totalorder %s69, %s85
      %p87 = scmp.eq.s32.totalorder %s21, 0
      %p88 = por %p86, %p87
      %s89 = ssub.s32 %s23, %s30
      %s90 = ssub.s32 %s22, %s34
      %s91 = sor.u32 %s89, %s90
      %p92 = scmp.eq.s32.totalorder %s91, 0
      %s94 = sadd.s32 %s93, 1
      %s95 = scalar_select %p92, %s93, %s94
      %p98 = pneg %p92
      %p99 = scmp.eq.s32.totalorder %s15, 1
      %p100 = por %p98, %p99
      %p101 = scmp.ne.s32.totalorder %s93, %s96
      %p102 = scmp.eq.s32.totalorder %s15, 0
      %p103 = por %p101, %p102
      %p104 = scmp.ne.s32.totalorder %s93, %s96
      %p105 = scmp.eq.s32.totalorder %s20, 1
      %p106 = por %p104, %p105
      %p107 = scmp.ne.s32.totalorder %s96, %s97
      %p108 = scmp.eq.s32.totalorder %s20, 0
      %p109 = por %p107, %p108
      %p110 = scmp.ne.s32.totalorder %s96, %s97
      %p111 = scmp.eq.s32.totalorder %s21, 1
      %p112 = por %p110, %p111
      %p114 = scmp.ne.s32.totalorder %s97, %s113
      %p115 = scmp.eq.s32.totalorder %s21, 0
      %p116 = por %p114, %p115
      %p117 = scmp.le.s32.totalorder 1, %s15
      %p118 = scmp.lt.s32.totalorder %s15, 3
      %p119 = pnand %p117, %p118
      %p120 = pneg %p119
      // Predicated region
      $region9: #{tpu_custom_call.1} parent=5 // pred_check
        _
      $region10: #{tpu_custom_call.1} parent=5 // pred_check_branch
        %122 = sbr.rel (%p119) target = $region12
      $region11: #{tpu_custom_call.1} parent=5 // pred_region
        %s123 = ssub.s32 %s15, 1
        // Predicated region
        $region13: #{tpu_custom_call.1} parent=11 // pred_check
          %p124 = pneg %p81
        $region14: #{tpu_custom_call.1} parent=11 // pred_check_branch
          %126 = sbr.rel (%p124) target = $region16
        $region15: #{tpu_custom_call.1} parent=11 // pred_region
          %s128 = ssub.s32 512, 512
          %129 = vsyncadd [#allocation6], %s128
          %s130 = smul.addr %s24, 128
          %s131 = scalar_lea.hbm %s1, %s130
          %s132 = sshll.u32 [#allocation5], 4
          %s133 = int_to_ptr.vmem [resolvable:$true] %s132
          %138 = dma.hbm_to_vmem [thread:$0]  %s131, 512, %s133, [#allocation6], 5120, 128, 8
        $region16: #{tpu_custom_call.1} parent=11 // pred_fallthru
          _
      $region12: #{tpu_custom_call.1} parent=5 // pred_fallthru
        _
      %p139 = scmp.lt.s32.totalorder %s15, 2
      // Predicated region
      $region17: #{tpu_custom_call.1} parent=5 // pred_check
        %p140 = pneg %p139
      $region18: #{tpu_custom_call.1} parent=5 // pred_check_branch
        %142 = sbr.rel (%p140) target = $region20
      $region19: #{tpu_custom_call.1} parent=5 // pred_region
        // Predicated region
        $region21: #{tpu_custom_call.1} parent=19 // pred_check
          %p143 = pneg %p49
        $region22: #{tpu_custom_call.1} parent=19 // pred_check_branch
          %145 = sbr.rel (%p143) target = $region24
        $region23: #{tpu_custom_call.1} parent=19 // pred_region
          %s146 = sand.u32 %s39, 1
          %s147 = scalar_lea.sflag [#allocation3], %s146
          %s148 = sand.u32 %s39, 1
          %s149 = smul.addr %s148, 32
          %s150 = scalar_lea.vmem [#allocation2], %s149
          %s152 = ssub.s32 512, 512
          %153 = vsyncadd %s147, %s152
          %s154 = smul.addr %s23, 4
          %s155 = sadd.s32 %s22, %s154
          %s156 = smul.addr %s155, 128
          %s157 = scalar_lea.hbm %s0, %s156
          %s158 = sshll.u32 %s150, 4
          %s159 = int_to_ptr.vmem [resolvable:$true] %s158
          %164 = dma.hbm_to_vmem [thread:$0]  %s157, 512, %s159, %s147, 128, 128, 8
        $region24: #{tpu_custom_call.1} parent=19 // pred_fallthru
          _
      $region20: #{tpu_custom_call.1} parent=5 // pred_fallthru
        _
      %p165 = scmp.le.s32.totalorder 1, %s15
      %p166 = scmp.lt.s32.totalorder %s15, 3
      %p167 = pnand %p165, %p166
      %p168 = pneg %p167
      // Predicated region
      $region25: #{tpu_custom_call.1} parent=5 // pred_check
        _
      $region26: #{tpu_custom_call.1} parent=5 // pred_check_branch
        %170 = sbr.rel (%p167) target = $region28
      $region27: #{tpu_custom_call.1} parent=5 // pred_region
        %s171 = ssub.s32 %s15, 1
        %s172 = sand.u32 %s42, 1
        %s173 = scalar_lea.sflag [#allocation3], %s172
        %s174 = sand.u32 %s42, 1
        %s175 = smul.addr %s174, 32
        %s176 = scalar_lea.vmem [#allocation2], %s175
        // Predicated region
        $region29: #{tpu_custom_call.1} parent=27 // pred_check
          %p177 = pneg %p55
        $region30: #{tpu_custom_call.1} parent=27 // pred_check_branch
          %179 = sbr.rel (%p177) target = $region32
        $region31: #{tpu_custom_call.1} parent=27 // pred_region
          %180 = dma.done %s173, 512
        $region32: #{tpu_custom_call.1} parent=27 // pred_fallthru
          _
        // Predicated region
        $region33: #{tpu_custom_call.1} parent=27 // pred_check
          %p181 = pneg %p81
        $region34: #{tpu_custom_call.1} parent=27 // pred_check_branch
          %183 = sbr.rel (%p181) target = $region36
        $region35: #{tpu_custom_call.1} parent=27 // pred_region
          %184 = dma.done [#allocation6], 512
        $region36: #{tpu_custom_call.1} parent=27 // pred_fallthru
          _
        %s185 = sand.u32 %s42, 1
        %s186 = scalar_lea.sflag [#allocation3], %s185
        %s187 = sand.u32 %s42, 1
        %s188 = smul.addr %s187, 32
        %s189 = scalar_lea.vmem [#allocation2], %s188
        %p190 = pneg %p55
        %p191 = pneg %p52
        %p192 = pneg %p81
        %p193 = pneg %p78
        %p194 = pneg %p109
        %p195 = pneg %p106
        %s196 = sand.u32 %s96, 1
        %s197 = scalar_lea.sflag [#allocation4], %s196
        %s198 = sand.u32 %s96, 1
        %s199 = smul.addr %s198, 32
        %s200 = scalar_lea.vmem [#allocation7], %s199
        %v201 = vld [vmem:[%s176] sm:$0xff]
        %v202 = vld [vmem:[%s176 + $0x8] sm:$0xff]
        %v203 = vld [vmem:[%s176 + $0x10] sm:$0xff]
        %v204 = vld [vmem:[%s176 + $0x18] sm:$0xff]
        %v205 = vld [vmem:[#allocation5] sm:$0xff]
        %v206 = vld [vmem:[#allocation5 + $0x8] sm:$0xff]
        %v207 = vld [vmem:[#allocation5 + $0x10] sm:$0xff]
        %v208 = vld [vmem:[#allocation5 + $0x18] sm:$0xff]
        %v209 = vadd.f32 %v201, %v205
        %v210 = vadd.f32 %v202, %v206
        %v211 = vadd.f32 %v203, %v207
        %v212 = vadd.f32 %v204, %v208
        %213 = vst [vmem:[%s200] sm:$0xff] %v209
        %214 = vst [vmem:[%s200 + $0x8] sm:$0xff] %v210
        %215 = vst [vmem:[%s200 + $0x10] sm:$0xff] %v211
        %216 = vst [vmem:[%s200 + $0x18] sm:$0xff] %v212
        %s217 = sand.u32 %s96, 1
        %s218 = scalar_lea.sflag [#allocation4], %s217
        %s219 = sand.u32 %s96, 1
        %s220 = smul.addr %s219, 32
        %s221 = scalar_lea.vmem [#allocation7], %s220
        // Predicated region
        $region37: #{tpu_custom_call.1} parent=27 // pred_check
          %p222 = pneg %p106
        $region38: #{tpu_custom_call.1} parent=27 // pred_check_branch
          %224 = sbr.rel (%p222) target = $region40
        $region39: #{tpu_custom_call.1} parent=27 // pred_region
          %s226 = ssub.s32 512, 512
          %227 = vsyncadd %s218, %s226
          %s228 = smul.addr %s25, 4
          %s229 = sadd.s32 %s24, %s228
          %s230 = smul.addr %s229, 128
          %s231 = scalar_lea.hbm %s2, %s230
          %s232 = sshll.u32 %s221, 4
          %s233 = int_to_ptr.vmem [resolvable:$true] %s232
          %238 = dma.vmem_to_hbm [thread:$0]  %s233, 512, %s231, %s218, 128, 128, 8
        $region40: #{tpu_custom_call.1} parent=27 // pred_fallthru
          _
      $region28: #{tpu_custom_call.1} parent=5 // pred_fallthru
        _
      %p239 = scmp.le.s32.totalorder 2, %s15
      // Predicated region
      $region41: #{tpu_custom_call.1} parent=5 // pred_check
        %p240 = pneg %p239
      $region42: #{tpu_custom_call.1} parent=5 // pred_check_branch
        %242 = sbr.rel (%p240) target = $region44
      $region43: #{tpu_custom_call.1} parent=5 // pred_region
        %s243 = ssub.s32 %s15, 2
        // Predicated region
        $region45: #{tpu_custom_call.1} parent=43 // pred_check
          %p244 = pneg %p112
        $region46: #{tpu_custom_call.1} parent=43 // pred_check_branch
          %246 = sbr.rel (%p244) target = $region48
        $region47: #{tpu_custom_call.1} parent=43 // pred_region
          %s247 = sand.u32 %s97, 1
          %s248 = scalar_lea.sflag [#allocation4], %s247
          %s249 = sand.u32 %s97, 1
          %s250 = smul.addr %s249, 32
          %s251 = scalar_lea.vmem [#allocation7], %s250
          %252 = dma.done %s248, 512
        $region48: #{tpu_custom_call.1} parent=43 // pred_fallthru
          _
      $region44: #{tpu_custom_call.1} parent=5 // pred_fallthru
        _
    $region6: #{tpu_custom_call.1} parent=1 // loop_footer
      %s19 = sadd.s32 1, %s15
    $region7: #{tpu_custom_call.1} parent=1 // loop_footer_branch
      %14 = sbr.rel target = $region3
    $region8: #{tpu_custom_call.1} parent=1 // loop_exit
      _
    %253 = vsyncpa [#allocation3], 1
    %s254 = scalar_lea.sflag [#allocation3], 1
    %255 = vsyncpa %s254, 1
    %256 = vsyncpa [#allocation6], 1
    %257 = vsyncpa [#allocation4], 1
    %s258 = scalar_lea.sflag [#allocation4], 1
    %259 = vsyncpa %s258, 1

</llo_original>
